<compile_context>
chip_gen: v7x
topology: tpu7x:2x2x1
jax: 0.10.0
libtpu: 0.0.40
codegen_flags: <defaults>
</compile_context>

<pallas_src>
import functools
import math

import jax
import jax.numpy as jnp
from jax import lax
from jax.experimental import pallas as pl
from jax.experimental.pallas import tpu as pltpu


# ----------------------------------------------------------------- VMEM budget / tiling
@functools.lru_cache(maxsize=None)
def _vmem_budget_bytes():
    """Generation-aware scoped-VMEM budget: ~75% of physical, capped at 96 MiB."""
    cap = 64 * 1024 * 1024  # conservative fallback (v7x per-TC size)
    try:
        info = pltpu.get_tpu_info()
        cap = int(getattr(info, "vmem_capacity_bytes", cap))
    except Exception:
        pass
    return min(int(cap * 3 // 4), 96 * 1024 * 1024)


def _pick_tile(dim, cap, align):
    """Largest tile <= cap that divides dim; prefers `align`-aligned tiles, never exceeds cap."""
    if dim <= cap:
        return dim
    for a in (align, 8, 1):
        start = (cap // a) * a
        for t in range(start, 0, -a):
            if t > 0 and dim % t == 0:
                return t
    return 1


# ------------------------------------------------------------------ tiled matmul kernel
def _matmul_kernel(a_ref, b_ref, o_ref, acc_ref):
    @pl.when(pl.program_id(2) == 0)
    def _():
        acc_ref[...] = jnp.zeros_like(acc_ref)

    acc_ref[...] += jnp.dot(a_ref[...], b_ref[...], preferred_element_type=jnp.float32)

    @pl.when(pl.program_id(2) == pl.num_programs(2) - 1)
    def _():
        o_ref[...] = acc_ref[...].astype(o_ref.dtype)


def pallas_matmul(a, b, *, out_dtype=None):
    """a: (M, K), b: (K, N) -> (M, N).  Tiled + pipelined, f32 accumulation."""
    M, K = a.shape
    K2, N = b.shape
    assert K == K2
    out_dtype = out_dtype or a.dtype
    tm = _pick_tile(M, 512, 128)
    tn = _pick_tile(N, 512, 128)
    tk = _pick_tile(K, 512, 128)
    assert M % tm == 0 and N % tn == 0 and K % tk == 0

    itm = max(a.dtype.itemsize, b.dtype.itemsize)
    out_itm = jnp.dtype(out_dtype).itemsize
    # double-buffered inputs + double-buffered output + f32 accumulator
    footprint = 2 * (tm * tk + tk * tn) * itm + 2 * tm * tn * out_itm + tm * tn * 4
    vmem_limit = min(_vmem_budget_bytes(), max(4 * footprint, 32 * 1024 * 1024))

    flops = 2 * M * N * K
    bytes_accessed = int(M * K * a.dtype.itemsize * (N // tn)
                         + K * N * b.dtype.itemsize * (M // tm)
                         + M * N * out_itm)
    return pl.pallas_call(
        _matmul_kernel,
        out_shape=jax.ShapeDtypeStruct((M, N), out_dtype),
        grid=(M // tm, N // tn, K // tk),
        in_specs=[
            pl.BlockSpec((tm, tk), lambda i, j, k: (i, k)),
            pl.BlockSpec((tk, tn), lambda i, j, k: (k, j)),
        ],
        out_specs=pl.BlockSpec((tm, tn), lambda i, j, k: (i, j)),
        scratch_shapes=[pltpu.VMEM((tm, tn), jnp.float32)],
        compiler_params=pltpu.CompilerParams(
            dimension_semantics=("parallel", "parallel", "arbitrary"),
            vmem_limit_bytes=vmem_limit),
        cost_estimate=pl.CostEstimate(flops=flops, transcendentals=0,
                                      bytes_accessed=bytes_accessed),
    )(a, b)


# ------------------------------------- chunked retention + fused rotary + RMSNorm-swish gate
def _retention_gate_kernel(qkvg_ref, qcos_ref, qsin_ref, kcos_ref, ksin_ref, w_ref,
                           o_ref, state_ref, oacc_ref, *,
                           num_heads, head_k_dim, head_v_dim, key_dim, value_dim,
                           chunk_size, eps):
    c = pl.program_id(1)

    @pl.when(c == 0)
    def _():
        state_ref[...] = jnp.zeros_like(state_ref)

    T = chunk_size
    dk = head_k_dim
    dv = head_v_dim
    half = dk // 2

    # Static column slices of the fused (T, 2K+2V) activation block (no wrapper slicing).
    q_raw = qkvg_ref[:, :key_dim].astype(jnp.float32)
    k_raw = qkvg_ref[:, key_dim:2 * key_dim].astype(jnp.float32)
    v_all = qkvg_ref[:, 2 * key_dim:2 * key_dim + value_dim].astype(jnp.float32)
    g_all = qkvg_ref[:, 2 * key_dim + value_dim:].astype(jnp.float32)

    def swap_halves(x):
        # per-head [x2 | x1] for non-interleaved rotary, built as one multi-piece concat
        parts = []
        for h in range(num_heads):
            seg = x[:, h * dk:(h + 1) * dk]
            parts.append(seg[:, half:])
            parts.append(seg[:, :half])
        return jnp.concatenate(parts, axis=-1)

    # Rotary + dk^-0.5 scale + rank-1 intra-chunk decay are all folded into the 4
    # precomputed (T, key_dim) f32 tables: two full-width FMAs each for q and k.
    qs_all = q_raw * qcos_ref[...] + swap_halves(q_raw) * qsin_ref[...]
    ks_all = k_raw * kcos_ref[...] + swap_halves(k_raw) * ksin_ref[...]

    ti = lax.broadcasted_iota(jnp.int32, (T, T), 0)
    si = lax.broadcasted_iota(jnp.int32, (T, T), 1)
    causal = ti >= si

    for h in range(num_heads):
        gamma = 1.0 - 2.0 ** (-5.0 - h)   # RetNet per-head decay, compile-time constant
        qs = qs_all[:, h * dk:(h + 1) * dk]          # scale * gamma^i  * rot(q_i)
        ks = ks_all[:, h * dk:(h + 1) * dk]          #         gamma^-j * rot(k_j)
        v = v_all[:, h * dv:(h + 1) * dv]

        # Intra-chunk: A[i,j] = scale * gamma^(i-j) q_i.k_j, causal.
        a = lax.dot_general(qs, ks, (((1,), (1,)), ((), ())),
                            preferred_element_type=jnp.float32)        # (T, T)
        a = jnp.where(causal, a, 0.0)

        s_old = state_ref[h]                                           # (dk, dv)
        o_h = jnp.dot(a, v, preferred_element_type=jnp.float32)        # (T, dv)
        # Inter-chunk: scale * gamma^(i+1) q_i @ S
        o_h += gamma * jnp.dot(qs, s_old, preferred_element_type=jnp.float32)

        # State update: S' = gamma^T S + gamma^(T-1) * sum_j gamma^-j k_j v_j^T
        kv = lax.dot_general(ks, v, (((0,), (0,)), ((), ())),
                             preferred_element_type=jnp.float32)       # (dk, dv)
        state_ref[h] = (gamma ** T) * s_old + (gamma ** (T - 1)) * kv

        # Fused per-head RMSNorm over head_v_dim; stage into the f32 VMEM scratch.
        var = jnp.mean(o_h * o_h, axis=-1, keepdims=True)
        oacc_ref[:, h * dv:(h + 1) * dv] = o_h * lax.rsqrt(var + eps)

    # Fused swish gate + norm weight: single lane-dense full-width store.
    gate = g_all * jax.nn.sigmoid(g_all)
    o_ref[...] = (oacc_ref[...] * w_ref[...] * gate).astype(o_ref.dtype)


def pallas_retention_gate(qkvg, qcos, qsin, kcos, ksin, g_norm_weight, *, batch, seq_len,
                          num_heads, head_k_dim, head_v_dim, key_dim, value_dim,
                          chunk_size, eps, out_dtype):
    """qkvg: (B*L, 2K+2V) fused projections -> gated retention output (B*L, value_dim)."""
    BL, W = qkvg.shape
    T = chunk_size
    assert seq_len % T == 0 and BL == batch * seq_len
    nc = seq_len // T

    w_full = jnp.tile(g_norm_weight.astype(jnp.float32), num_heads).reshape(1, value_dim)

    kernel = functools.partial(_retention_gate_kernel, num_heads=num_heads,
                               head_k_dim=head_k_dim, head_v_dim=head_v_dim,
                               key_dim=key_dim, value_dim=value_dim,
                               chunk_size=T, eps=eps)

    flops = int(2 * batch * nc * num_heads * (T * T * head_k_dim + T * T * head_v_dim
                                              + 2 * T * head_k_dim * head_v_dim))
    transcendentals = int(BL * value_dim)  # sigmoid gate
    bytes_accessed = int(qkvg.size * qkvg.dtype.itemsize
                         + batch * 4 * seq_len * key_dim * 4
                         + BL * value_dim * jnp.dtype(out_dtype).itemsize)

    return pl.pallas_call(
        kernel,
        out_shape=jax.ShapeDtypeStruct((BL, value_dim), out_dtype),
        grid=(batch, nc),
        in_specs=[
            pl.BlockSpec((T, W), lambda b, c: (b * nc + c, 0)),         # fused qkvg rows
            pl.BlockSpec((T, key_dim), lambda b, c: (c, 0)),            # q decay*rot tables
            pl.BlockSpec((T, key_dim), lambda b, c: (c, 0)),
            pl.BlockSpec((T, key_dim), lambda b, c: (c, 0)),            # k decay*rot tables
            pl.BlockSpec((T, key_dim), lambda b, c: (c, 0)),
            pl.BlockSpec((1, value_dim), lambda b, c: (0, 0)),          # g_norm weight
        ],
        out_specs=pl.BlockSpec((T, value_dim), lambda b, c: (b * nc + c, 0)),
        scratch_shapes=[
            pltpu.VMEM((num_heads, head_k_dim, head_v_dim), jnp.float32),  # recurrent state
            pltpu.VMEM((T, value_dim), jnp.float32),                       # per-head staging
        ],
        compiler_params=pltpu.CompilerParams(
            dimension_semantics=("parallel", "arbitrary"),  # chunk axis is a recurrence
            vmem_limit_bytes=_vmem_budget_bytes()),
        cost_estimate=pl.CostEstimate(flops=flops, transcendentals=transcendentals,
                                      bytes_accessed=bytes_accessed),
    )(qkvg, qcos, qsin, kcos, ksin, w_full)


# ------------------------------------------------------- fused rotary + decay tables (glue)
def retention_tables(seq_len, chunk_size, num_heads, head_k_dim, base=10000.0):
    """Precompute (L, num_heads*head_k_dim) f32 tables folding rotary cos/sin (sign-folded,
    duplicated halves), the dk^-0.5 scale, and the per-head intra-chunk decay gamma^i /
    gamma^-i (i = position mod chunk_size)."""
    dk = head_k_dim
    scale = dk ** -0.5
    inv_freq = 1.0 / (base ** (jnp.arange(0, dk, 2, dtype=jnp.float32) / dk))
    t = jnp.arange(seq_len, dtype=jnp.float32)
    freqs = jnp.outer(t, inv_freq)                          # (L, dk/2)
    cos = jnp.cos(freqs)
    sin = jnp.sin(freqs)
    cos_full = jnp.concatenate([cos, cos], axis=-1)         # (L, dk)
    sin_full = jnp.concatenate([-sin, sin], axis=-1)        # (L, dk) sign folded
    pos = jnp.mod(t, float(chunk_size))[:, None]            # intra-chunk position (L, 1)

    qc, qs, kc, ks = [], [], [], []
    for h in range(num_heads):
        gamma = 1.0 - 2.0 ** (-5.0 - h)
        log2g = math.log2(gamma)
        d_q = scale * jnp.exp2(log2g * pos)                 # dk^-0.5 * gamma^i
        d_k = jnp.exp2(-log2g * pos)                        # gamma^-i (bounded, T <= 128)
        qc.append(cos_full * d_q)
        qs.append(sin_full * d_q)
        kc.append(cos_full * d_k)
        ks.append(sin_full * d_k)
    cat = lambda xs: jnp.concatenate(xs, axis=-1)
    return cat(qc), cat(qs), cat(kc), cat(ks)


# --------------------------------------------------------------------- parameter init
def xavier_uniform(key, shape, gain):
    # nn.Linear weight shape is (out_features, in_features): fan_in = in, fan_out = out
    fan_out, fan_in = shape
    limit = gain * math.sqrt(6.0 / (fan_in + fan_out))
    return jax.random.uniform(key, shape, jnp.float32, -limit, limit)


def init_params(key, d_model, key_dim, value_dim, head_v_dim):
    gain = 2.0 ** (-2.5)
    ks = jax.random.split(key, 5)
    Wq = xavier_uniform(ks[0], (key_dim, d_model), gain)
    Wk = xavier_uniform(ks[1], (key_dim, d_model), gain)
    Wv = xavier_uniform(ks[2], (value_dim, d_model), gain)
    Wg = xavier_uniform(ks[3], (value_dim, d_model), gain)
    Wo = xavier_uniform(ks[4], (d_model, value_dim), gain)
    return {
        # Pre-fused / pre-transposed weights (hoisted out of the per-call forward).
        "W_qkvg": jnp.concatenate([Wq, Wk, Wv, Wg], axis=0).T,   # (D, 2K+2V)
        "Wo_T": Wo.T,                                            # (value_dim, D)
        "g_norm_weight": jnp.ones((head_v_dim,), jnp.float32),
    }


# --------------------------------------------------------------------- forward pass
def multiscale_retention_forward(hidden_states, params, *, num_heads, eps=1e-5,
                                 chunk_cap=128):
    B, L, D = hidden_states.shape
    act_dtype = hidden_states.dtype
    W_qkvg = params["W_qkvg"]
    Wo_T = params["Wo_T"]
    total = W_qkvg.shape[1]
    value_dim = Wo_T.shape[0]
    key_dim = (total - 2 * value_dim) // 2
    H = num_heads
    dk = key_dim // H
    dv = value_dim // H
    assert dk % 2 == 0, "head_qk_dim must be even for rotary"

    x2d = hidden_states.reshape(B * L, D)

    # Single fused q/k/v/g projection (activations read from HBM once); output flows
    # straight into the retention kernel — no wrapper-level slicing.
    qkvg = pallas_matmul(x2d, W_qkvg.astype(act_dtype), out_dtype=act_dtype)

    # Chunk size <= 128 keeps the rank-1 gamma^-j decomposition well conditioned in f32.
    T = _pick_tile(L, chunk_cap, 8)
    assert L % T == 0

    qcos, qsin, kcos, ksin = retention_tables(L, T, H, dk)

    # Chunked causal retention with rotary/decay fused via tables, plus fused per-head
    # RMSNorm + swish gate in the epilogue.  Output stays lane-dense (B*L, H*dv).
    o_gated = pallas_retention_gate(qkvg, qcos, qsin, kcos, ksin, params["g_norm_weight"],
                                    batch=B, seq_len=L, num_heads=H,
                                    head_k_dim=dk, head_v_dim=dv,
                                    key_dim=key_dim, value_dim=value_dim,
                                    chunk_size=T, eps=eps, out_dtype=act_dtype)

    out = pallas_matmul(o_gated, Wo_T.astype(act_dtype), out_dtype=act_dtype)
    return out.reshape(B, L, D)


# --------------------------------------------------------------------------- main
if __name__ == "__main__":
    # Small shapes consistent with the module (expand_k=1, expand_v=2, num_heads=4).
    B, L = 2, 8
    d_model = 32
    num_heads = 4
    expand_k, expand_v = 1, 2
    key_dim = int(d_model * expand_k)       # 32
    value_dim = int(d_model * expand_v)     # 64
    head_v_dim = value_dim // num_heads     # 16

    root = jax.random.PRNGKey(0)
    k_param, k_x = jax.random.split(root)
    params = init_params(k_param, d_model, key_dim, value_dim, head_v_dim)
    hidden_states = jax.random.normal(k_x, (B, L, d_model), jnp.float32)

    out = multiscale_retention_forward(hidden_states, params, num_heads=num_heads)
    out = jax.block_until_ready(out)
    assert out.shape == (B, L, d_model)
    assert jnp.all(jnp.isfinite(out))
    print("KERNEL_OK")
</pallas_src>

<mosaic_0001>
module attributes {stable_mosaic.version = 11 : i64} {
  func.func @_matmul_kernel(%arg0: i32, %arg1: i32, %arg2: i32, %arg3: memref<16x32xf32, #tpu.memory_space<vmem>>, %arg4: memref<32x192xf32, #tpu.memory_space<vmem>>, %arg5: memref<16x192xf32, #tpu.memory_space<vmem>>, %arg6: memref<16x192xf32, #tpu.memory_space<vmem>>) attributes {dimension_semantics = [#tpu.dimension_semantics<parallel>, #tpu.dimension_semantics<parallel>, #tpu.dimension_semantics<arbitrary>], iteration_bounds = array<i64: 1, 1, 1>, scalar_prefetch = 0 : i64, scratch_operands = 1 : i64, tpu.core_type = #tpu.core_type<tc>, window_params = [{transform_indices = @transform_0, window_bounds = array<i64: 16, 32>}, {transform_indices = @transform_1, window_bounds = array<i64: 32, 192>}, {transform_indices = @transform_2, window_bounds = array<i64: 16, 192>}]} {
    %c0_i32 = arith.constant 0 : i32
    %0 = arith.cmpi eq, %arg2, %c0_i32 : i32
    %1 = arith.extui %0 : i1 to i32
    %c0_i32_0 = arith.constant 0 : i32
    %2 = arith.cmpi ne, %1, %c0_i32_0 : i32
    scf.if %2 {
      %cst_10 = arith.constant 0.000000e+00 : f32
      %12 = vector.broadcast %cst_10 : f32 to vector<16x192xf32>
      %c0_11 = arith.constant 0 : index
      %c0_12 = arith.constant 0 : index
      %13 = vector.load %arg6[%c0_11, %c0_12] : memref<16x192xf32, #tpu.memory_space<vmem>>, vector<16x192xf32>
      tpu.vector_store %arg6[%c0_11, %c0_12], %12 {strides = array<i32>} : memref<16x192xf32, #tpu.memory_space<vmem>>, vector<16x192xf32>,
    } else {
    }
    %c0 = arith.constant 0 : index
    %c0_1 = arith.constant 0 : index
    %3 = vector.load %arg6[%c0, %c0_1] : memref<16x192xf32, #tpu.memory_space<vmem>>, vector<16x192xf32>
    %c0_2 = arith.constant 0 : index
    %c0_3 = arith.constant 0 : index
    %4 = vector.load %arg3[%c0_2, %c0_3] : memref<16x32xf32, #tpu.memory_space<vmem>>, vector<16x32xf32>
    %c0_4 = arith.constant 0 : index
    %c0_5 = arith.constant 0 : index
    %5 = vector.load %arg4[%c0_4, %c0_5] : memref<32x192xf32, #tpu.memory_space<vmem>>, vector<32x192xf32>
    %cst = arith.constant dense<0.000000e+00> : vector<16x192xf32>
    %6 = tpu.matmul %4, %5, %cst {dimension_numbers = #tpu.dot_dimension_numbers<[1], [0], [0], [1], [0, 0, 1, 1], [], []>} : vector<16x32xf32>, vector<32x192xf32>, vector<16x192xf32> -> vector<16x192xf32>
    %7 = arith.addf %3, %6 : vector<16x192xf32>
    %c0_6 = arith.constant 0 : index
    %c0_7 = arith.constant 0 : index
    %8 = vector.load %arg6[%c0_6, %c0_7] : memref<16x192xf32, #tpu.memory_space<vmem>>, vector<16x192xf32>
    tpu.vector_store %arg6[%c0_6, %c0_7], %7 {strides = array<i32>} : memref<16x192xf32, #tpu.memory_space<vmem>>, vector<16x192xf32>,
    %c0_i32_8 = arith.constant 0 : i32
    %9 = arith.cmpi eq, %arg2, %c0_i32_8 : i32
    %10 = arith.extui %9 : i1 to i32
    %c0_i32_9 = arith.constant 0 : i32
    %11 = arith.cmpi ne, %10, %c0_i32_9 : i32
    scf.if %11 {
      %c0_10 = arith.constant 0 : index
      %c0_11 = arith.constant 0 : index
      %12 = vector.load %arg6[%c0_10, %c0_11] : memref<16x192xf32, #tpu.memory_space<vmem>>, vector<16x192xf32>
      %c0_12 = arith.constant 0 : index
      %c0_13 = arith.constant 0 : index
      %13 = vector.load %arg5[%c0_12, %c0_13] : memref<16x192xf32, #tpu.memory_space<vmem>>, vector<16x192xf32>
      tpu.vector_store %arg5[%c0_12, %c0_13], %12 {strides = array<i32>} : memref<16x192xf32, #tpu.memory_space<vmem>>, vector<16x192xf32>,
    } else {
    }
    return
  }
  func.func @transform_0(%arg0: i32, %arg1: i32, %arg2: i32) -> (i32, i32) {
    %c0_i32 = arith.constant 0 : i32
    return %arg0, %arg2 : i32, i32
  }
  func.func @transform_1(%arg0: i32, %arg1: i32, %arg2: i32) -> (i32, i32) {
    %c0_i32 = arith.constant 0 : i32
    return %arg2, %arg1 : i32, i32
  }
  func.func @transform_2(%arg0: i32, %arg1: i32, %arg2: i32) -> (i32, i32) {
    %c0_i32 = arith.constant 0 : i32
    return %arg0, %arg1 : i32, i32
  }
}

</mosaic_0001>

<llo_original>
// kernel: tpu_custom_call.1
$region0: #{tpu_custom_call.1}
  #allocation0 [shape = 'u32[]', space=smem, size = 0x4, offset = 0x4, fixed_abs, tag = 'smem constant byte address 0x4 - core index']
  #allocation1 [shape = 'u32[144,128]{1,0:T(1,128)}', space=vmem, size = 0x12000, scoped, tag = 'internal scratch']
  #allocation2 [shape = 'f32[16,192]{1,0:T(8,128)}', space=vmem, size = 0x4000, scoped, tag = 'scratch operand']
  %s0 = inlined_call_operand.hbm [shape: f32[16,32], index: 0, kind: input, shape index: {}]
  %s1 = inlined_call_operand.hbm [shape: f32[32,192], index: 1, kind: input, shape index: {}]
  %s2 = inlined_call_operand.hbm [shape: f32[16,192], index: 2, kind: output, shape index: {}]
  %s3 = sld [smem:[#allocation0]]
  $region34: #{tpu_custom_call.1} parent=0
    _
  %s5 = ssub.s32 1, %s3
  %s6 = scalar_select 0, %s5, %s3
  $region1: #{tpu_custom_call.1} parent=0
    #allocation3 [shape = 'u8[8192]{0}', space=vmem, size = 0x2000, scoped, tag = 'input window, operand 0, single buffered']
    #allocation4 [shape = 's32[1]{0}', space=sflag, size = 0x4, scoped, tag = 'scoped memory for tpu_custom_call.1']
    #allocation5 [shape = 's32[1]{0}', space=sflag, size = 0x4, scoped, tag = 'scoped memory for tpu_custom_call.1']
    #allocation6 [shape = 'u8[32768]{0}', space=vmem, size = 0x8000, scoped, tag = 'input window, operand 1, single buffered']
    #allocation7 [shape = 's32[1]{0}', space=sflag, size = 0x4, scoped, tag = 'scoped memory for tpu_custom_call.1']
    #allocation8 [shape = 'u8[16384]{0}', space=vmem, size = 0x4000, scoped, tag = 'output window, operand 0, single buffered']
    %7 = vsyncpa [#allocation4], 0
    %8 = vsyncpa [#allocation7], 0
    %9 = vsyncpa [#allocation5], 0
    // Predicated region
    $region2: #{tpu_custom_call.1} parent=1 // pred_check
      _
    $region3: #{tpu_custom_call.1} parent=1 // pred_check_branch
      %11 = sbr.rel (0) target = $region5
    $region4: #{tpu_custom_call.1} parent=1 // pred_region
      %s13 = ssub.s32 256, 256
      %14 = vsyncadd [#allocation4], %s13
      %s15 = sshll.u32 [#allocation3], 4
      %s16 = int_to_ptr.vmem [resolvable:$true] %s15
      %21 = dma.hbm_to_vmem [thread:$0]  %s0, 256, %s16, [#allocation4], 128, 128, 8
    $region5: #{tpu_custom_call.1} parent=1 // pred_fallthru
      _
    // Predicated region
    $region6: #{tpu_custom_call.1} parent=1 // pred_check
      _
    $region7: #{tpu_custom_call.1} parent=1 // pred_check_branch
      %23 = sbr.rel (0) target = $region9
    $region8: #{tpu_custom_call.1} parent=1 // pred_region
      %s25 = ssub.s32 1024, 1024
      %26 = vsyncadd [#allocation7], %s25
      %s27 = sshll.u32 [#allocation6], 4
      %s28 = int_to_ptr.vmem [resolvable:$true] %s27
      %33 = dma.hbm_to_vmem [thread:$0]  %s1, 1024, %s28, [#allocation7], 256, 256, 16
    $region9: #{tpu_custom_call.1} parent=1 // pred_fallthru
      _
    // Predicated region
    $region10: #{tpu_custom_call.1} parent=1 // pred_check
      _
    $region11: #{tpu_custom_call.1} parent=1 // pred_check_branch
      %35 = sbr.rel (0) target = $region13
    $region12: #{tpu_custom_call.1} parent=1 // pred_region
      %36 = dma.done [#allocation4], 256
    $region13: #{tpu_custom_call.1} parent=1 // pred_fallthru
      _
    // Predicated region
    $region14: #{tpu_custom_call.1} parent=1 // pred_check
      _
    $region15: #{tpu_custom_call.1} parent=1 // pred_check_branch
      %38 = sbr.rel (0) target = $region17
    $region16: #{tpu_custom_call.1} parent=1 // pred_region
      %39 = dma.done [#allocation7], 1024
    $region17: #{tpu_custom_call.1} parent=1 // pred_fallthru
      _
    %p40 = scmp.eq.s32.totalorder 0, 0
    // Predicated region
    $region18: #{tpu_custom_call.1} parent=1 // pred_check
      %p41 = pneg %p40
    $region19: #{tpu_custom_call.1} parent=1 // pred_check_branch
      %43 = sbr.rel (%p41) target = $region21
    $region20: #{tpu_custom_call.1} parent=1 // pred_region
      %44 = vst [vmem:[#allocation2] sm:$0xff] 0.0
      %vm45 = vcmask 523264
      %46 = vst.msk [vmem:[#allocation2 + $0x8] sm:$0xff] %vm45, 0.0
      %47 = vst [vmem:[#allocation2 + $0x10] sm:$0xff] 0.0
      %48 = vst.msk [vmem:[#allocation2 + $0x18] sm:$0xff] %vm45, 0.0
    $region21: #{tpu_custom_call.1} parent=1 // pred_fallthru
      _
    %v49 = vld [vmem:[#allocation2] sm:$0xff]
    %v50 = vld [vmem:[#allocation2 + $0x8] sm:$0xff]
    %v51 = vld [vmem:[#allocation2 + $0x10] sm:$0xff]
    %v52 = vld [vmem:[#allocation2 + $0x18] sm:$0xff]
    %v53 = vld [vmem:[#allocation3] sm:$0xff]
    %v54 = vld [vmem:[#allocation3 + $0x8] sm:$0xff]
    %v55 = vld [vmem:[#allocation6] sm:$0xff]
    %v56 = vld [vmem:[#allocation6 + $0x8] sm:$0xff]
    %v57 = vld [vmem:[#allocation6 + $0x10] sm:$0xff]
    %v58 = vld [vmem:[#allocation6 + $0x18] sm:$0xff]
    %v59 = vld [vmem:[#allocation6 + $0x20] sm:$0xff]
    %v60 = vld [vmem:[#allocation6 + $0x28] sm:$0xff]
    %v61 = vld [vmem:[#allocation6 + $0x30] sm:$0xff]
    %v62 = vld [vmem:[#allocation6 + $0x38] sm:$0xff]
    %vm63 = vcmask 261120
    %v65 = vsel %vm63, %v53, 0
    %v68 = vsel %vm63, %v54, 0
    %70 = vmatprep.subr.mxu0 %v56
    %71 = vmatpush1.msra.mxu0 %v55
    %72 = vmatprep.subr.mxu0 %v58
    %73 = vmatpush1.msra.mxu0 %v57
    %74 = vmatprep.subr.mxu0 %v60
    %75 = vmatpush1.msra.mxu0 %v59
    %76 = vmatprep.subr.mxu0 %v62
    %77 = vmatpush1.msra.mxu0 %v61
    %78 = vmatprep.subr.mxu0 0.0
    %79 = vmatpush1.msra.mxu0 0.0
    %80 = vmatprep.subr.mxu0 0.0
    %81 = vmatpush1.msra.mxu0 0.0
    %82 = vmatprep.subr.mxu0 0.0
    %83 = vmatpush1.msra.mxu0 0.0
    %84 = vmatprep.subr.mxu0 0.0
    %85 = vmatpush1.msra.mxu0 0.0
    %86 = vmatprep.subr.mxu0 0.0
    %87 = vmatpush1.msra.mxu0 0.0
    %88 = vmatprep.subr.mxu0 0.0
    %89 = vmatpush1.msra.mxu0 0.0
    %90 = vmatprep.subr.mxu0 0.0
    %91 = vmatpush1.msra.mxu0 0.0
    %92 = vmatprep.subr.mxu0 0.0
    %93 = vmatpush1.msra.mxu0 0.0
    %94 = vmatprep.subr.mxu0 0.0
    %95 = vmatpush1.msra.mxu0 0.0
    %96 = vmatprep.subr.mxu0 0.0
    %97 = vmatpush1.msra.mxu0 0.0
    %98 = vmatprep.subr.mxu0 0.0
    %99 = vmatpush1.msra.mxu0 0.0
    %100 = vmatprep.subr.mxu0 0.0
    %101 = vmatpush1.msra.mxu0 0.0
    %102 = vmatprep.subr.mxu0 0.0
    %103 = vmatpush1.msra.mxu0 0.0
    %104 = vmatprep.subr.mxu0 0.0
    %105 = vmatpush1.msra.mxu0 0.0
    %106 = vmatprep.subr.mxu0 0.0
    %107 = vmatpush1.msra.mxu0 0.0
    %108 = vmatprep.subr.mxu0 0.0
    %109 = vmatpush1.msra.mxu0 0.0
    %110 = vmatprep.subr.mxu0 0.0
    %111 = vmatpush1.msra.mxu0 0.0
    %112 = vmatprep.subr.mxu0 0.0
    %113 = vmatpush1.msra.mxu0 0.0
    %114 = vmatprep.subr.mxu0 0.0
    %115 = vmatpush1.msra.mxu0 0.0
    %116 = vmatprep.subr.mxu0 0.0
    %117 = vmatpush1.msra.mxu0 0.0
    %118 = vmatprep.subr.mxu0 0.0
    %119 = vmatpush1.msra.mxu0 0.0
    %120 = vmatprep.subr.mxu0 0.0
    %121 = vmatpush1.msra.mxu0 0.0
    %122 = vmatprep.subr.mxu0 0.0
    %123 = vmatpush1.msra.mxu0 0.0
    %124 = vmatprep.subr.mxu0 0.0
    %125 = vmatpush1.msra.mxu0 0.0
    %126 = vmatprep.subr.mxu0 0.0
    %127 = vmatpush1.msra.mxu0 0.0
    %128 = vmatprep.subr.mxu0 0.0
    %129 = vmatpush1.msra.mxu0 0.0
    %130 = vmatprep.subr.mxu0 0.0
    %131 = vmatpush1.msra.mxu0 0.0
    %132 = vmatprep.subr.mxu0 0.0
    %133 = vmatpush1.msra.mxu0 0.0
    %134 = vmatprep.mubr.f32.mxu0 0.0
    %135 = vmatmul.mubr.f32.gmra.mrb[0].mxu0 %v65
    %v136 = vpop.f32.mrb[0].mxu0
    %v137 = vadd.f32 0.0, %v136
    %v138 = vpop.f32.mrb[0].mxu0
    %v139 = vadd.f32 0.0, %v138
    %140 = vmatprep.mubr.f32.mxu0 0.0
    %141 = vmatmul.mubr.f32.gmra.mrb[0].mxu0 %v68
    %v142 = vpop.f32.mrb[0].mxu0
    %v143 = vadd.f32 0.0, %v142
    %v144 = vpop.f32.mrb[0].mxu0
    %v145 = vadd.f32 0.0, %v144
    %146 = vdwg.mxu0
    %v147 = vadd.f32 %v49, %v137
    %v148 = vadd.f32 %v50, %v139
    %v149 = vadd.f32 %v51, %v143
    %v150 = vadd.f32 %v52, %v145
    %151 = vst [vmem:[#allocation2] sm:$0xff] %v147
    %vm152 = vcmask 523264
    %153 = vst.msk [vmem:[#allocation2 + $0x8] sm:$0xff] %vm152, %v148
    %154 = vst [vmem:[#allocation2 + $0x10] sm:$0xff] %v149
    %155 = vst.msk [vmem:[#allocation2 + $0x18] sm:$0xff] %vm152, %v150
    // Predicated region
    $region22: #{tpu_custom_call.1} parent=1 // pred_check
      %p156 = pneg %p40
    $region23: #{tpu_custom_call.1} parent=1 // pred_check_branch
      %158 = sbr.rel (%p156) target = $region25
    $region24: #{tpu_custom_call.1} parent=1 // pred_region
      %v159 = vld [vmem:[#allocation2] sm:$0xff]
      %v160 = vld [vmem:[#allocation2 + $0x8] sm:$0xff]
      %v161 = vld [vmem:[#allocation2 + $0x10] sm:$0xff]
      %v162 = vld [vmem:[#allocation2 + $0x18] sm:$0xff]
      %163 = vst [vmem:[#allocation8] sm:$0xff] %v159
      %164 = vst.msk [vmem:[#allocation8 + $0x8] sm:$0xff] %vm152, %v160
      %165 = vst [vmem:[#allocation8 + $0x10] sm:$0xff] %v161
      %166 = vst.msk [vmem:[#allocation8 + $0x18] sm:$0xff] %vm152, %v162
    $region25: #{tpu_custom_call.1} parent=1 // pred_fallthru
      _
    // Predicated region
    $region26: #{tpu_custom_call.1} parent=1 // pred_check
      _
    $region27: #{tpu_custom_call.1} parent=1 // pred_check_branch
      %168 = sbr.rel (0) target = $region29
    $region28: #{tpu_custom_call.1} parent=1 // pred_region
      %s170 = ssub.s32 512, 512
      %171 = vsyncadd [#allocation5], %s170
      %s172 = sshll.u32 [#allocation8], 4
      %s173 = int_to_ptr.vmem [resolvable:$true] %s172
      %178 = dma.vmem_to_hbm [thread:$0]  %s173, 512, %s2, [#allocation5], 256, 256, 16
    $region29: #{tpu_custom_call.1} parent=1 // pred_fallthru
      _
    // Predicated region
    $region30: #{tpu_custom_call.1} parent=1 // pred_check
      _
    $region31: #{tpu_custom_call.1} parent=1 // pred_check_branch
      %180 = sbr.rel (0) target = $region33
    $region32: #{tpu_custom_call.1} parent=1 // pred_region
      %181 = dma.done [#allocation5], 512
    $region33: #{tpu_custom_call.1} parent=1 // pred_fallthru
      _
    %182 = vsyncpa [#allocation4], 1
    %183 = vsyncpa [#allocation7], 1
    %184 = vsyncpa [#allocation5], 1

</llo_original>
